<compile_context>
chip_gen: v7x
topology: tpu7x:2x2x1
jax: 0.10.0
libtpu: 0.0.40
codegen_flags: <defaults>
</compile_context>

<pallas_src>
import jax
import jax.numpy as jnp
from jax.experimental import pallas as pl
from jax.experimental.pallas import tpu as pltpu

LOG_STD_MAX = 2.0
LOG_STD_MIN = -20.0

_LANES = 128
_SUBLANES = 8

# Whole-problem-in-VMEM (no grid) path is used when the packed batch has at
# most this many rows; below this, per-step pipeline overhead dominates.
_SINGLE_BLOCK_PACKED_ROWS = 1024

# VMEM byte budget for the two double-buffered streams (packed feats + packed
# out) in the tiled path.  Conservative for every generation (v7x: 32 MiB
# scoped default / 64 MiB physical).
_PIPELINE_VMEM_BUDGET = 16 * 1024 * 1024


def _round_up(x, m):
    return (x + m - 1) // m * m


def _round_down(x, m):
    return x // m * m


def _pack_factor(in_features, size):
    """Rows packed per wide row.

    Chosen so the matmul input is ~128 lanes wide (lane-dense vld, no 4x VMEM
    padding on the feats block) and the output is p*2S lanes wide.  The MXU
    work grows ~2p vs. the mu-only matmul (the std columns are zeros), so cap
    p at 8 to stay HBM-bound even with v5e's slower f32 MXU path.
    """
    del size
    if in_features >= _LANES:
        return 1
    return max(1, min(_LANES // in_features, 8))


def _diag_normal_kernel(feats_ref, w_ref, bstd_ref, out_ref):
    # feats_ref : (TNP, p*F)   packed feats (p original rows per packed row), VMEM
    # w_ref     : (p*F, p*2S)  block-diagonal [w_t | 0_S] blocks, resident
    # bstd_ref  : (1,  p*2S)   tiled [bias | stddev] row, resident
    # out_ref   : (TNP, p*2S)  packed flat_params rows
    out_ref[...] = (
        jnp.dot(feats_ref[...], w_ref[...], preferred_element_type=jnp.float32)
        + bstd_ref[...]
    ).astype(out_ref.dtype)


def _single_block_call(feats_p, w_big, bstd):
    """Whole-problem-in-VMEM path for small/medium batches (no grid overhead)."""
    n_p, _ = feats_p.shape
    out_w = w_big.shape[1]
    return pl.pallas_call(
        _diag_normal_kernel,
        out_shape=jax.ShapeDtypeStruct((n_p, out_w), feats_p.dtype),
        in_specs=[pl.BlockSpec(memory_space=pltpu.MemorySpace.VMEM)] * 3,
        out_specs=pl.BlockSpec(memory_space=pltpu.MemorySpace.VMEM),
    )(feats_p, w_big, bstd)


def _tiled_call(feats_p, w_big, bstd):
    """Batch-tiled, software-pipelined path for large batches."""
    n_p, in_w = feats_p.shape
    out_w = w_big.shape[1]
    itemsize = jnp.dtype(feats_p.dtype).itemsize

    # (8,128)-padding-aware per-row VMEM footprint of the two streamed blocks.
    feats_row_bytes = _round_up(in_w, _LANES) * itemsize
    out_row_bytes = _round_up(out_w, _LANES) * itemsize
    stream_row_bytes = feats_row_bytes + out_row_bytes

    # Largest tile the double-buffered pipeline budget allows.
    max_tile = _round_down(_PIPELINE_VMEM_BUDGET // (2 * stream_row_bytes), _SUBLANES)
    max_tile = max(max_tile, _SUBLANES)
    # Keep at least ~4 grid steps so v7x's two TensorCores both get work (the
    # batch axis is marked "parallel"); never shrink below one sublane group.
    tile = min(max_tile, max(_round_up(pl.cdiv(n_p, 4), _SUBLANES), _SUBLANES))

    grid = (pl.cdiv(n_p, tile),)

    # Padding-aware VMEM limit: streamed blocks double-buffered + resident
    # weight / bias-std blocks (counted double-buffered to be safe) + slack.
    resident_bytes = (
        _round_up(in_w, _SUBLANES) * _round_up(out_w, _LANES)
        + _SUBLANES * _round_up(out_w, _LANES)
    ) * itemsize
    vmem_limit = 2 * tile * stream_row_bytes + 2 * resident_bytes + (2 << 20)
    vmem_limit = int(min(max(vmem_limit, 4 << 20), 40 << 20))

    return pl.pallas_call(
        _diag_normal_kernel,
        out_shape=jax.ShapeDtypeStruct((n_p, out_w), feats_p.dtype),
        grid=grid,
        in_specs=[
            pl.BlockSpec((tile, in_w), lambda i: (i, 0)),   # packed feats tile
            pl.BlockSpec((in_w, out_w), lambda i: (0, 0)),  # block-diag W, resident
            pl.BlockSpec((1, out_w), lambda i: (0, 0)),     # [bias | std] row, resident
        ],
        out_specs=pl.BlockSpec((tile, out_w), lambda i: (i, 0)),
        compiler_params=pltpu.CompilerParams(
            dimension_semantics=("parallel",),  # rows independent: 2-TC shard on v7x
            vmem_limit_bytes=vmem_limit,
        ),
    )(feats_p, w_big, bstd)


def diag_normal_pd_forward(feats, w_t, b, logstd):
    """feats: (N, F); w_t: (F, S) (transposed PyTorch weight); b, logstd: (S,).

    Returns flat_params (N, 2*S) = [mu | stddev], matching
    DiagNormalPDType.forward (indep_std=True branch).
    """
    n, f = feats.shape
    s = w_t.shape[1]
    dtype = jnp.float32

    feats = feats.astype(dtype)
    w_t = w_t.astype(dtype)
    b = b.astype(dtype)
    # stddev does not depend on feats: the tiny (S,)-sized clamp+exp runs once
    # here, outside the kernel hot path.
    std = jnp.exp(jnp.clip(logstd.astype(dtype), LOG_STD_MIN, LOG_STD_MAX))

    p = _pack_factor(f, s)

    # Pad N to a multiple of the packing factor so the row-major packing
    # reshape is exact; padded rows are sliced off again below.
    n_pad = _round_up(n, p)
    if n_pad != n:
        feats = jnp.pad(feats, ((0, n_pad - n), (0, 0)))
    feats_p = feats.reshape(n_pad // p, p * f)                    # (N/p, p*F)

    # Block-diagonal weight with zero columns where stddev goes: one matmul
    # then writes the packed [mu|std, ...] layout directly (no in-kernel
    # concat / reshape / relayout), and the std values arrive via the bias row.
    w_big = jnp.zeros((p * f, p * 2 * s), dtype)
    for r in range(p):
        w_big = w_big.at[r * f:(r + 1) * f, r * 2 * s:r * 2 * s + s].set(w_t)
    bstd = jnp.tile(jnp.concatenate([b, std]), p)[None, :]        # (1, p*2S)

    n_p = n_pad // p
    if n_p <= _SINGLE_BLOCK_PACKED_ROWS:
        out_p = _single_block_call(feats_p, w_big, bstd)
    else:
        out_p = _tiled_call(feats_p, w_big, bstd)

    # Row-major unpack back to (N, 2S) flat_params (cheap XLA-side reshape/slice).
    return out_p.reshape(n_pad, 2 * s)[:n]


def _orthogonal_init(key, rows, cols, gain):
    """Deterministic orthogonal init (matches nn.init.orthogonal_ semantics)."""
    a = jax.random.normal(key, (max(rows, cols), min(rows, cols)), dtype=jnp.float32)
    q, r = jnp.linalg.qr(a)
    q = q * jnp.sign(jnp.diag(r))[None, :]   # sign correction for uniqueness
    if rows < cols:
        q = q.T
    return gain * q[:rows, :cols]


def _reference(feats, w_t, b, logstd):
    mu = feats @ w_t + b[None, :]
    std = jnp.broadcast_to(
        jnp.exp(jnp.clip(logstd, LOG_STD_MIN, LOG_STD_MAX))[None, :], mu.shape
    )
    return jnp.concatenate([mu, std], axis=-1)


if __name__ == "__main__":
    key = jax.random.PRNGKey(0)
    k_feat, k_w, k_big = jax.random.split(key, 3)

    # Small shapes consistent with the module: batch N=8, in_features=32, size=8.
    N, IN_FEATURES, SIZE = 8, 32, 8

    feats = jax.random.normal(k_feat, (N, IN_FEATURES), dtype=jnp.float32)

    # PyTorch weight is (SIZE, IN_FEATURES); keep the transposed copy for the kernel.
    w = _orthogonal_init(k_w, SIZE, IN_FEATURES, gain=0.01)   # (SIZE, IN_FEATURES)
    w_t = jnp.asarray(w.T)                                    # (IN_FEATURES, SIZE)
    b = jnp.zeros((SIZE,), dtype=jnp.float32)
    logstd = jnp.zeros((SIZE,), dtype=jnp.float32)            # ExpandVector init

    out = jax.block_until_ready(diag_normal_pd_forward(feats, w_t, b, logstd))
    ref = _reference(feats, w_t, b, logstd)
    assert out.shape == (N, 2 * SIZE)
    assert jnp.allclose(out, ref, atol=2e-5, rtol=1e-5)

    # Large, deliberately ragged batch: exercises the pipelined grid path, the
    # N % pack-factor padding, the partial last tile, and both clamp bounds.
    N_BIG = 33003
    feats_big = jax.random.normal(k_big, (N_BIG, IN_FEATURES), dtype=jnp.float32)
    logstd_big = jnp.linspace(-25.0, 3.0, SIZE, dtype=jnp.float32)
    out_big = jax.block_until_ready(
        diag_normal_pd_forward(feats_big, w_t, b, logstd_big)
    )
    ref_big = _reference(feats_big, w_t, b, logstd_big)
    assert out_big.shape == (N_BIG, 2 * SIZE)
    assert jnp.allclose(out_big, ref_big, atol=2e-5, rtol=1e-5)

    print("KERNEL_OK")
</pallas_src>

<mosaic_0001>
module attributes {stable_mosaic.version = 11 : i64} {
  func.func @_diag_normal_kernel(%arg0: memref<2x128xf32, #tpu.memory_space<vmem>>, %arg1: memref<128x64xf32, #tpu.memory_space<vmem>>, %arg2: memref<1x64xf32, #tpu.memory_space<vmem>>, %arg3: memref<2x64xf32, #tpu.memory_space<vmem>>) attributes {dimension_semantics = [], scalar_prefetch = 0 : i64, scratch_operands = 0 : i64, tpu.core_type = #tpu.core_type<tc>} {
    %c0 = arith.constant 0 : index
    %c0_0 = arith.constant 0 : index
    %0 = vector.load %arg0[%c0, %c0_0] : memref<2x128xf32, #tpu.memory_space<vmem>>, vector<2x128xf32>
    %c0_1 = arith.constant 0 : index
    %c0_2 = arith.constant 0 : index
    %1 = vector.load %arg1[%c0_1, %c0_2] : memref<128x64xf32, #tpu.memory_space<vmem>>, vector<128x64xf32>
    %cst = arith.constant dense<0.000000e+00> : vector<2x64xf32>
    %2 = tpu.matmul %0, %1, %cst {dimension_numbers = #tpu.dot_dimension_numbers<[1], [0], [0], [1], [0, 0, 1, 1], [], []>} : vector<2x128xf32>, vector<128x64xf32>, vector<2x64xf32> -> vector<2x64xf32>
    %c0_3 = arith.constant 0 : index
    %c0_4 = arith.constant 0 : index
    %3 = vector.load %arg2[%c0_3, %c0_4] : memref<1x64xf32, #tpu.memory_space<vmem>>, vector<1x64xf32>
    %4 = vector.broadcast %3 : vector<1x64xf32> to vector<2x64xf32>
    %5 = arith.addf %2, %4 : vector<2x64xf32>
    %c0_5 = arith.constant 0 : index
    %c0_6 = arith.constant 0 : index
    %6 = vector.load %arg3[%c0_5, %c0_6] : memref<2x64xf32, #tpu.memory_space<vmem>>, vector<2x64xf32>
    tpu.vector_store %arg3[%c0_5, %c0_6], %5 {strides = array<i32>} : memref<2x64xf32, #tpu.memory_space<vmem>>, vector<2x64xf32>,
    return
  }
}

</mosaic_0001>

<llo_original>
// kernel: tpu_custom_call.1
$region0: #{tpu_custom_call.1}
  #allocation0 [shape = 'u32[]', space=smem, size = 0x4, offset = 0x4, fixed_abs, tag = 'smem constant byte address 0x4 - core index']
  #allocation1 [shape = 'u32[144,128]{1,0:T(1,128)}', space=vmem, size = 0x12000, scoped, tag = 'internal scratch']
  %s0 = inlined_call_operand.vmem [shape: f32[2,128], index: 0, kind: input, shape index: {}]
  %s1 = inlined_call_operand.vmem [shape: f32[128,64], index: 1, kind: input, shape index: {}]
  %s2 = inlined_call_operand.vmem [shape: f32[1,64], index: 2, kind: input, shape index: {}]
  %s3 = inlined_call_operand.hbm [shape: f32[2,64], index: 3, kind: output, shape index: {}]
  %s4 = sld [smem:[#allocation0]]
  $region22: #{tpu_custom_call.1} parent=0
    _
  %s6 = ssub.s32 1, %s4
  %s7 = scalar_select 0, %s6, %s4
  $region1: #{tpu_custom_call.1} parent=0
    #allocation2 [shape = 'u8[1024]{0}', space=vmem, size = 0x400, scoped, tag = 'output window, operand 0, single buffered']
    #allocation3 [shape = 's32[1]{0}', space=sflag, size = 0x4, scoped, tag = 'scoped memory for tpu_custom_call.1']
    %8 = vsyncpa [#allocation3], 0
    // Predicated region
    $region2: #{tpu_custom_call.1} parent=1 // pred_check
      _
    $region3: #{tpu_custom_call.1} parent=1 // pred_check_branch
      %10 = sbr.rel (0) target = $region5
    $region4: #{tpu_custom_call.1} parent=1 // pred_region
      _
    $region5: #{tpu_custom_call.1} parent=1 // pred_fallthru
      _
    // Predicated region
    $region6: #{tpu_custom_call.1} parent=1 // pred_check
      _
    $region7: #{tpu_custom_call.1} parent=1 // pred_check_branch
      %12 = sbr.rel (0) target = $region9
    $region8: #{tpu_custom_call.1} parent=1 // pred_region
      _
    $region9: #{tpu_custom_call.1} parent=1 // pred_fallthru
      _
    // Predicated region
    $region10: #{tpu_custom_call.1} parent=1 // pred_check
      _
    $region11: #{tpu_custom_call.1} parent=1 // pred_check_branch
      %14 = sbr.rel (0) target = $region13
    $region12: #{tpu_custom_call.1} parent=1 // pred_region
      _
    $region13: #{tpu_custom_call.1} parent=1 // pred_fallthru
      _
    %v15 = vld [vmem:[%s0] sm:$0x3]
    %v16 = vld [vmem:[%s1] sm:$0xff]
    %v17 = vld [vmem:[%s1 + $0x8] sm:$0xff]
    %v18 = vld [vmem:[%s1 + $0x10] sm:$0xff]
    %v19 = vld [vmem:[%s1 + $0x18] sm:$0xff]
    %v20 = vld [vmem:[%s1 + $0x20] sm:$0xff]
    %v21 = vld [vmem:[%s1 + $0x28] sm:$0xff]
    %v22 = vld [vmem:[%s1 + $0x30] sm:$0xff]
    %v23 = vld [vmem:[%s1 + $0x38] sm:$0xff]
    %v24 = vld [vmem:[%s1 + $0x40] sm:$0xff]
    %v25 = vld [vmem:[%s1 + $0x48] sm:$0xff]
    %v26 = vld [vmem:[%s1 + $0x50] sm:$0xff]
    %v27 = vld [vmem:[%s1 + $0x58] sm:$0xff]
    %v28 = vld [vmem:[%s1 + $0x60] sm:$0xff]
    %v29 = vld [vmem:[%s1 + $0x68] sm:$0xff]
    %v30 = vld [vmem:[%s1 + $0x70] sm:$0xff]
    %v31 = vld [vmem:[%s1 + $0x78] sm:$0xff]
    %v32 = vld [vmem:[%s2] sm:$0x1]
    %v34 = vlaneseq
    %v35 = vshrl.u32 %v34, 7
    %v36 = vsub.s32 0, %v35
    %v37 = vrot.slane %v32, %v36
    %39 = vmatprep.subr.mxu0 0.0
    %40 = vmatpush1.msra.mxu0 %v16
    %41 = vmatprep.subr.mxu0 0.0
    %42 = vmatpush1.msra.mxu0 %v17
    %43 = vmatprep.subr.mxu0 0.0
    %44 = vmatpush1.msra.mxu0 %v18
    %45 = vmatprep.subr.mxu0 0.0
    %46 = vmatpush1.msra.mxu0 %v19
    %47 = vmatprep.subr.mxu0 0.0
    %48 = vmatpush1.msra.mxu0 %v20
    %49 = vmatprep.subr.mxu0 0.0
    %50 = vmatpush1.msra.mxu0 %v21
    %51 = vmatprep.subr.mxu0 0.0
    %52 = vmatpush1.msra.mxu0 %v22
    %53 = vmatprep.subr.mxu0 0.0
    %54 = vmatpush1.msra.mxu0 %v23
    %55 = vmatprep.subr.mxu0 0.0
    %56 = vmatpush1.msra.mxu0 %v24
    %57 = vmatprep.subr.mxu0 0.0
    %58 = vmatpush1.msra.mxu0 %v25
    %59 = vmatprep.subr.mxu0 0.0
    %60 = vmatpush1.msra.mxu0 %v26
    %61 = vmatprep.subr.mxu0 0.0
    %62 = vmatpush1.msra.mxu0 %v27
    %63 = vmatprep.subr.mxu0 0.0
    %64 = vmatpush1.msra.mxu0 %v28
    %65 = vmatprep.subr.mxu0 0.0
    %66 = vmatpush1.msra.mxu0 %v29
    %67 = vmatprep.subr.mxu0 0.0
    %68 = vmatpush1.msra.mxu0 %v30
    %69 = vmatprep.subr.mxu0 0.0
    %70 = vmatpush1.msra.mxu0 %v31
    %71 = vmatprep.subr.mxu0 0.0
    %72 = vmatpush1.msra.mxu0 0.0
    %73 = vmatprep.subr.mxu0 0.0
    %74 = vmatpush1.msra.mxu0 0.0
    %75 = vmatprep.subr.mxu0 0.0
    %76 = vmatpush1.msra.mxu0 0.0
    %77 = vmatprep.subr.mxu0 0.0
    %78 = vmatpush1.msra.mxu0 0.0
    %79 = vmatprep.subr.mxu0 0.0
    %80 = vmatpush1.msra.mxu0 0.0
    %81 = vmatprep.subr.mxu0 0.0
    %82 = vmatpush1.msra.mxu0 0.0
    %83 = vmatprep.subr.mxu0 0.0
    %84 = vmatpush1.msra.mxu0 0.0
    %85 = vmatprep.subr.mxu0 0.0
    %86 = vmatpush1.msra.mxu0 0.0
    %87 = vmatprep.subr.mxu0 0.0
    %88 = vmatpush1.msra.mxu0 0.0
    %89 = vmatprep.subr.mxu0 0.0
    %90 = vmatpush1.msra.mxu0 0.0
    %91 = vmatprep.subr.mxu0 0.0
    %92 = vmatpush1.msra.mxu0 0.0
    %93 = vmatprep.subr.mxu0 0.0
    %94 = vmatpush1.msra.mxu0 0.0
    %95 = vmatprep.subr.mxu0 0.0
    %96 = vmatpush1.msra.mxu0 0.0
    %97 = vmatprep.subr.mxu0 0.0
    %98 = vmatpush1.msra.mxu0 0.0
    %99 = vmatprep.subr.mxu0 0.0
    %100 = vmatpush1.msra.mxu0 0.0
    %101 = vmatprep.subr.mxu0 0.0
    %102 = vmatpush1.msra.mxu0 0.0
    %103 = vmatprep.mubr.f32.mxu0 0.0
    %104 = vmatmul.mubr.f32.gmra.mrb[0].mxu0 %v15
    %v105 = vpop.f32.mrb[0].mxu0
    %v106 = vadd.f32 %v37, %v105
    %v107 = vpop.f32.mrb[0].mxu0
    %108 = vdwg.mxu0
    %vm109 = vcmask 517120
    %110 = vst.msk [vmem:[#allocation2] sm:$0x3] %vm109, %v106
    // Predicated region
    $region14: #{tpu_custom_call.1} parent=1 // pred_check
      _
    $region15: #{tpu_custom_call.1} parent=1 // pred_check_branch
      %112 = sbr.rel (0) target = $region17
    $region16: #{tpu_custom_call.1} parent=1 // pred_region
      %s114 = ssub.s32 32, 32
      %115 = vsyncadd [#allocation3], %s114
      %s117 = sshll.u32 [#allocation2], 4
      %s118 = int_to_ptr.vmem [resolvable:$true] %s117
      %120 = dma.vmem_to_hbm [thread:$0]  %s118, 32, %s3, [#allocation3]
    $region17: #{tpu_custom_call.1} parent=1 // pred_fallthru
      _
    // Predicated region
    $region18: #{tpu_custom_call.1} parent=1 // pred_check
      _
    $region19: #{tpu_custom_call.1} parent=1 // pred_check_branch
      %122 = sbr.rel (0) target = $region21
    $region20: #{tpu_custom_call.1} parent=1 // pred_region
      %123 = dma.done [#allocation3], 32
    $region21: #{tpu_custom_call.1} parent=1 // pred_fallthru
      _
    %124 = vsyncpa [#allocation3], 1

</llo_original>
